<compile_context>
chip_gen: v5e
topology: v5e:2x2
jax: 0.10.0
libtpu: 0.0.40
codegen_flags: <defaults>
</compile_context>

<pallas_src>
import functools

import jax
import jax.numpy as jnp
from jax import lax
from jax.experimental import pallas as pl
from jax.experimental.pallas import tpu as pltpu


def _round_up(x, m):
    return (x + m - 1) // m * m


def _choose_bm(batch, block_m):
    """Largest power-of-two M tile (8..block_m) with minimal row padding."""
    cands = []
    v = 8
    while v <= max(8, block_m):
        cands.append(v)
        v *= 2
    pads = {c: _round_up(batch, c) for c in cands}
    min_pad = min(pads.values())
    slack = max(0, batch // 16)          # allow tiny extra waste for a bigger tile
    return max(c for c in cands if pads[c] <= min_pad + slack)


def _layer_kernel(x_ref, w_ref, p_ref, o_ref, *scratch,
                  out_dim_real, eps, neg_slope):
    # x_ref: (bm, tk)  w_ref: (tk, n_pad)  p_ref: (3, n_pad) = [bias; gamma; beta]
    # o_ref: (bm, n_pad).  scratch = (acc_ref,) only when o_ref is not f32.
    acc_ref = scratch[0] if scratch else o_ref   # f32 output => accumulate in place
    k = pl.program_id(1)
    nk = pl.num_programs(1)

    @pl.when(k == 0)
    def _():
        acc_ref[...] = jnp.zeros_like(acc_ref)

    # K-tiled matmul on the MXU; operands arrive pre-cast (bf16 or f32),
    # accumulation is always f32.
    acc_ref[...] += jnp.dot(x_ref[...], w_ref[...],
                            preferred_element_type=jnp.float32)

    # Epilogue (bias + LayerNorm + LeakyReLU) only on the last K step, all f32.
    @pl.when(k == nk - 1)
    def _():
        bias = p_ref[0:1, :].astype(jnp.float32)
        gamma = p_ref[1:2, :].astype(jnp.float32)
        beta = p_ref[2:3, :].astype(jnp.float32)

        y = acc_ref[...].astype(jnp.float32) + bias
        n_pad = y.shape[-1]
        if out_dim_real == n_pad:
            mean = jnp.mean(y, axis=-1, keepdims=True)
            centered = y - mean
            var = jnp.mean(centered * centered, axis=-1, keepdims=True)
        else:
            # out_dim padded to a multiple of 128 for lane-dense stores; mask
            # the padded columns out of the LayerNorm statistics.
            col = lax.broadcasted_iota(jnp.int32, (1, n_pad), 1)
            mask = col < out_dim_real
            inv_n = 1.0 / out_dim_real
            mean = jnp.sum(jnp.where(mask, y, 0.0), axis=-1, keepdims=True) * inv_n
            centered = y - mean
            var = jnp.sum(jnp.where(mask, centered * centered, 0.0),
                          axis=-1, keepdims=True) * inv_n

        y_norm = centered * lax.rsqrt(var + eps)            # EUP rsqrt
        y_aff = y_norm * gamma + beta
        out = jnp.where(y_aff >= 0, y_aff, neg_slope * y_aff)
        o_ref[...] = out.astype(o_ref.dtype)


@functools.partial(
    jax.jit,
    static_argnames=("block_m", "block_k", "mxu_dtype", "eps", "neg_slope"))
def layer_forward(x, w, b, gamma, beta, *, block_m=256, block_k=None,
                  mxu_dtype=jnp.bfloat16, eps=1e-5, neg_slope=0.2):
    """x: (B, in_dim); w: (in_dim, out_dim); b/gamma/beta: (out_dim,).

    mxu_dtype controls the MXU operand dtype (pre-cast in this wrapper so DMA
    bytes actually shrink).  Accumulation and the LayerNorm/LeakyReLU epilogue
    are always f32.  block_k=None lets the kernel keep the whole padded K in
    one block when it fits VMEM (weight slab resident across all M tiles).
    """
    B, in_dim = x.shape
    out_dim = w.shape[1]
    out_dtype = x.dtype
    use_scratch = out_dtype != jnp.float32   # f32 output => accumulate into o_ref

    # ---- tile plan (all multiples of (8, 128)), VMEM-budget aware ----------
    bm = _choose_bm(B, block_m)
    b_pad = _round_up(B, bm)
    while b_pad // bm < 2 and bm > 8:        # keep v7x's 2nd TensorCore busy
        bm //= 2
        b_pad = _round_up(B, bm)

    n_pad = _round_up(out_dim, 128)          # lane-dense output width
    k_full = _round_up(in_dim, 128)

    x_it = jnp.dtype(mxu_dtype).itemsize
    w_it = x_it
    out_it = jnp.dtype(out_dtype).itemsize

    def vmem_use(tk_):
        return (2 * bm * tk_ * x_it            # x double buffer
                + 2 * tk_ * n_pad * w_it       # W double buffer
                + 2 * 3 * n_pad * 4            # packed params
                + 2 * bm * n_pad * out_it      # output double buffer
                + (bm * n_pad * 4 if use_scratch else 0))

    budget = 48 * 1024 * 1024                  # conservative: fits v7x 64 MiB VMEM
    if block_k is None:
        tk = k_full                            # try to keep W resident across M tiles
    else:
        tk = min(k_full, _round_up(block_k, 128))
    while tk > 128 and vmem_use(tk) > budget:
        tk = max(128, _round_up(tk // 2, 128))
    k_pad = _round_up(in_dim, tk)
    nk = k_pad // tk
    m_tiles = b_pad // bm

    # ---- padding + operand pre-cast (bf16 halves DMA + VMEM bytes) ---------
    x_p = jnp.pad(x, ((0, b_pad - B), (0, k_pad - in_dim)))
    w_p = jnp.pad(w, ((0, k_pad - in_dim), (0, n_pad - out_dim)))
    if x_p.dtype != mxu_dtype:
        x_p = x_p.astype(mxu_dtype)
    if w_p.dtype != mxu_dtype:
        w_p = w_p.astype(mxu_dtype)
    params = jnp.stack([
        jnp.pad(b.astype(jnp.float32), (0, n_pad - out_dim)),
        jnp.pad(gamma.astype(jnp.float32), (0, n_pad - out_dim)),
        jnp.pad(beta.astype(jnp.float32), (0, n_pad - out_dim)),
    ])                                          # (3, n_pad), f32 epilogue params

    # With nk == 1 the W block index is constant, so W is DMA'd exactly once.
    w_traffic = k_pad * n_pad * w_it * (m_tiles if nk > 1 else 1)
    cost = pl.CostEstimate(
        flops=2 * b_pad * k_pad * n_pad + 10 * b_pad * n_pad,
        transcendentals=b_pad,
        bytes_accessed=(b_pad * k_pad * x_it + w_traffic + 3 * n_pad * 4
                        + b_pad * n_pad * out_it))

    kernel = functools.partial(_layer_kernel, out_dim_real=out_dim, eps=eps,
                               neg_slope=neg_slope)
    scratch_shapes = ([pltpu.VMEM((bm, n_pad), jnp.float32)]
                      if use_scratch else [])
    vmem_limit = min(100 * 1024 * 1024,
                     max(32 * 1024 * 1024, vmem_use(tk) + 2 * 1024 * 1024))

    out_p = pl.pallas_call(
        kernel,
        out_shape=jax.ShapeDtypeStruct((b_pad, n_pad), out_dtype),
        grid_spec=pltpu.PrefetchScalarGridSpec(
            num_scalar_prefetch=0,
            grid=(m_tiles, nk),
            in_specs=[
                pl.BlockSpec((bm, tk), lambda m, k: (m, k)),        # x tile
                pl.BlockSpec((tk, n_pad), lambda m, k: (k, 0)),     # W K-tile
                pl.BlockSpec((3, n_pad), lambda m, k: (0, 0)),      # bias/gamma/beta
            ],
            out_specs=pl.BlockSpec((bm, n_pad), lambda m, k: (m, 0)),
            scratch_shapes=scratch_shapes,
        ),
        compiler_params=pltpu.CompilerParams(
            dimension_semantics=("parallel", "arbitrary"),
            vmem_limit_bytes=int(vmem_limit),
        ),
        cost_estimate=cost,
    )(x_p, w_p, params)

    return out_p[:B, :out_dim]


def init_params(key, in_dim, out_dim):
    """Matches nn.Linear default init (uniform +/- 1/sqrt(in_dim)) and
    nn.LayerNorm defaults (gamma=1, beta=0). Weight stored (in_dim, out_dim)
    so the kernel computes x @ W (== x @ torch_weight.T)."""
    k_w, k_b = jax.random.split(key)
    bound = 1.0 / jnp.sqrt(in_dim)
    w = jax.random.uniform(k_w, (in_dim, out_dim), jnp.float32, -bound, bound)
    b = jax.random.uniform(k_b, (out_dim,), jnp.float32, -bound, bound)
    gamma = jnp.ones((out_dim,), jnp.float32)
    beta = jnp.zeros((out_dim,), jnp.float32)
    return w, b, gamma, beta


def _reference(x, w, b, gamma, beta, mxu_dtype=jnp.float32, eps=1e-5):
    y = jnp.dot(x.astype(mxu_dtype), w.astype(mxu_dtype),
                preferred_element_type=jnp.float32) + b
    mean = jnp.mean(y, axis=-1, keepdims=True)
    var = jnp.mean((y - mean) ** 2, axis=-1, keepdims=True)
    yn = (y - mean) / jnp.sqrt(var + eps) * gamma + beta
    return jnp.where(yn >= 0, yn, 0.2 * yn)


if __name__ == "__main__":
    key = jax.random.PRNGKey(0)
    k_x1, k_p1, k_x2, k_p2, k_x3, k_p3 = jax.random.split(key, 6)

    # Case 1: small shapes matching the module's typical MLP layer, f32 MXU,
    # strict tolerance against the f32 reference.
    batch1, in1, od1 = 8, 32, 64
    x1 = jax.random.normal(k_x1, (batch1, in1), jnp.float32)
    w1, b1, g1, bt1 = init_params(k_p1, in1, od1)
    y1 = jax.block_until_ready(
        layer_forward(x1, w1, b1, g1, bt1, mxu_dtype=jnp.float32))
    ref1 = _reference(x1, w1, b1, g1, bt1)
    assert y1.shape == (batch1, od1)
    assert jnp.allclose(y1, ref1, atol=1e-4, rtol=1e-4), "case 1 mismatch"

    # Case 2: non-aligned dims + multiple K tiles (exercises padding, masked
    # LayerNorm, and the accumulate-into-output init/finalize path), f32 MXU.
    batch2, in2, od2 = 48, 200, 96
    x2 = jax.random.normal(k_x2, (batch2, in2), jnp.float32)
    w2, b2, g2, bt2 = init_params(k_p2, in2, od2)
    y2 = jax.block_until_ready(
        layer_forward(x2, w2, b2, g2, bt2, block_k=128, mxu_dtype=jnp.float32))
    ref2 = _reference(x2, w2, b2, g2, bt2)
    assert y2.shape == (batch2, od2)
    assert jnp.allclose(y2, ref2, atol=1e-4, rtol=1e-4), "case 2 mismatch"

    # Case 3: default bf16 MXU operands (pre-cast in the wrapper), compared
    # against a bf16-operand / f32-accumulate reference with a looser tol.
    batch3, in3, od3 = 48, 256, 128
    x3 = jax.random.normal(k_x3, (batch3, in3), jnp.float32)
    w3, b3, g3, bt3 = init_params(k_p3, in3, od3)
    y3 = jax.block_until_ready(layer_forward(x3, w3, b3, g3, bt3))
    ref3 = _reference(x3, w3, b3, g3, bt3, mxu_dtype=jnp.bfloat16)
    assert y3.shape == (batch3, od3)
    assert jnp.allclose(y3, ref3, atol=2e-2, rtol=2e-2), "case 3 mismatch"

    print("KERNEL_OK")
</pallas_src>

<mosaic_0001>
module attributes {stable_mosaic.version = 11 : i64} {
  func.func @_layer_kernel(%arg0: i32, %arg1: i32, %arg2: memref<8x128xf32, #tpu.memory_space<vmem>>, %arg3: memref<128x128xf32, #tpu.memory_space<vmem>>, %arg4: memref<3x128xf32, #tpu.memory_space<vmem>>, %arg5: memref<8x128xf32, #tpu.memory_space<vmem>>) attributes {dimension_semantics = [#tpu.dimension_semantics<parallel>, #tpu.dimension_semantics<arbitrary>], iteration_bounds = array<i64: 1, 1>, scalar_prefetch = 0 : i64, scratch_operands = 0 : i64, tpu.core_type = #tpu.core_type<tc>, window_params = [{transform_indices = @transform_0, window_bounds = array<i64: 8, 128>}, {transform_indices = @transform_1, window_bounds = array<i64: 128, 128>}, {pipeline_mode = #tpu.pipeline_mode<synchronous>, transform_indices = @transform_2, window_bounds = array<i64: 3, 128>}, {transform_indices = @transform_3, window_bounds = array<i64: 8, 128>}]} {
    %c0_i32 = arith.constant 0 : i32
    %0 = arith.cmpi eq, %arg1, %c0_i32 : i32
    %1 = arith.extui %0 : i1 to i32
    %c0_i32_0 = arith.constant 0 : i32
    %2 = arith.cmpi ne, %1, %c0_i32_0 : i32
    scf.if %2 {
      %cst_10 = arith.constant 0.000000e+00 : f32
      %12 = vector.broadcast %cst_10 : f32 to vector<8x128xf32>
      %c0_11 = arith.constant 0 : index
      %c0_12 = arith.constant 0 : index
      %13 = vector.load %arg5[%c0_11, %c0_12] : memref<8x128xf32, #tpu.memory_space<vmem>>, vector<8x128xf32>
      tpu.vector_store %arg5[%c0_11, %c0_12], %12 {strides = array<i32>} : memref<8x128xf32, #tpu.memory_space<vmem>>, vector<8x128xf32>,
    } else {
    }
    %c0 = arith.constant 0 : index
    %c0_1 = arith.constant 0 : index
    %3 = vector.load %arg5[%c0, %c0_1] : memref<8x128xf32, #tpu.memory_space<vmem>>, vector<8x128xf32>
    %c0_2 = arith.constant 0 : index
    %c0_3 = arith.constant 0 : index
    %4 = vector.load %arg2[%c0_2, %c0_3] : memref<8x128xf32, #tpu.memory_space<vmem>>, vector<8x128xf32>
    %c0_4 = arith.constant 0 : index
    %c0_5 = arith.constant 0 : index
    %5 = vector.load %arg3[%c0_4, %c0_5] : memref<128x128xf32, #tpu.memory_space<vmem>>, vector<128x128xf32>
    %cst = arith.constant dense<0.000000e+00> : vector<8x128xf32>
    %6 = tpu.matmul %4, %5, %cst {dimension_numbers = #tpu.dot_dimension_numbers<[1], [0], [0], [1], [0, 0, 1, 1], [], []>} : vector<8x128xf32>, vector<128x128xf32>, vector<8x128xf32> -> vector<8x128xf32>
    %7 = arith.addf %3, %6 : vector<8x128xf32>
    %c0_6 = arith.constant 0 : index
    %c0_7 = arith.constant 0 : index
    %8 = vector.load %arg5[%c0_6, %c0_7] : memref<8x128xf32, #tpu.memory_space<vmem>>, vector<8x128xf32>
    tpu.vector_store %arg5[%c0_6, %c0_7], %7 {strides = array<i32>} : memref<8x128xf32, #tpu.memory_space<vmem>>, vector<8x128xf32>,
    %c0_i32_8 = arith.constant 0 : i32
    %9 = arith.cmpi eq, %arg1, %c0_i32_8 : i32
    %10 = arith.extui %9 : i1 to i32
    %c0_i32_9 = arith.constant 0 : i32
    %11 = arith.cmpi ne, %10, %c0_i32_9 : i32
    scf.if %11 {
      %c0_10 = arith.constant 0 : index
      %c0_11 = arith.constant 0 : index
      %12 = vector.load %arg4[%c0_10, %c0_11] : memref<3x128xf32, #tpu.memory_space<vmem>>, vector<1x128xf32>
      %c1 = arith.constant 1 : index
      %c0_12 = arith.constant 0 : index
      %13 = vector.load %arg4[%c1, %c0_12] : memref<3x128xf32, #tpu.memory_space<vmem>>, vector<1x128xf32>
      %c2 = arith.constant 2 : index
      %c0_13 = arith.constant 0 : index
      %14 = vector.load %arg4[%c2, %c0_13] : memref<3x128xf32, #tpu.memory_space<vmem>>, vector<1x128xf32>
      %c0_14 = arith.constant 0 : index
      %c0_15 = arith.constant 0 : index
      %15 = vector.load %arg5[%c0_14, %c0_15] : memref<8x128xf32, #tpu.memory_space<vmem>>, vector<8x128xf32>
      %16 = vector.broadcast %12 : vector<1x128xf32> to vector<8x128xf32>
      %17 = arith.addf %15, %16 : vector<8x128xf32>
      %18 = tpu.iota {dimensions = array<i32: 1>} : vector<1x128xi32>
      %c64_i32 = arith.constant 64 : i32
      %19 = vector.broadcast %c64_i32 : i32 to vector<1x128xi32>
      %20 = arith.cmpi slt, %18, %19 : vector<1x128xi32>
      %cst_16 = arith.constant 0.000000e+00 : f32
      %21 = vector.shape_cast %20 : vector<1x128xi1> to vector<1x128xi1>
      %22 = vector.broadcast %21 : vector<1x128xi1> to vector<8x128xi1>
      %23 = vector.broadcast %cst_16 : f32 to vector<8x128xf32>
      %24 = arith.select %22, %17, %23 : vector<8x128xi1>, vector<8x128xf32>
      %cst_17 = arith.constant dense<0.000000e+00> : vector<8xf32>
      %25 = vector.multi_reduction <add>, %24, %cst_17 [1] : vector<8x128xf32> to vector<8xf32>
      %26 = vector.shape_cast %25 : vector<8xf32> to vector<8x1xf32>
      %cst_18 = arith.constant 1.562500e-02 : f32
      %27 = vector.broadcast %cst_18 : f32 to vector<8x1xf32>
      %28 = arith.mulf %26, %27 : vector<8x1xf32>
      %29 = vector.broadcast %28 : vector<8x1xf32> to vector<8x128xf32>
      %30 = arith.subf %17, %29 : vector<8x128xf32>
      %31 = arith.mulf %30, %30 : vector<8x128xf32>
      %cst_19 = arith.constant 0.000000e+00 : f32
      %32 = vector.shape_cast %20 : vector<1x128xi1> to vector<1x128xi1>
      %33 = vector.broadcast %32 : vector<1x128xi1> to vector<8x128xi1>
      %34 = vector.broadcast %cst_19 : f32 to vector<8x128xf32>
      %35 = arith.select %33, %31, %34 : vector<8x128xi1>, vector<8x128xf32>
      %cst_20 = arith.constant dense<0.000000e+00> : vector<8xf32>
      %36 = vector.multi_reduction <add>, %35, %cst_20 [1] : vector<8x128xf32> to vector<8xf32>
      %37 = vector.shape_cast %36 : vector<8xf32> to vector<8x1xf32>
      %cst_21 = arith.constant 1.562500e-02 : f32
      %38 = vector.broadcast %cst_21 : f32 to vector<8x1xf32>
      %39 = arith.mulf %37, %38 : vector<8x1xf32>
      %cst_22 = arith.constant 9.99999974E-6 : f32
      %40 = vector.broadcast %cst_22 : f32 to vector<8x1xf32>
      %41 = arith.addf %39, %40 : vector<8x1xf32>
      %42 = math.rsqrt %41 : vector<8x1xf32>
      %43 = vector.broadcast %42 : vector<8x1xf32> to vector<8x128xf32>
      %44 = arith.mulf %30, %43 : vector<8x128xf32>
      %45 = vector.broadcast %13 : vector<1x128xf32> to vector<8x128xf32>
      %46 = arith.mulf %44, %45 : vector<8x128xf32>
      %47 = vector.broadcast %14 : vector<1x128xf32> to vector<8x128xf32>
      %48 = arith.addf %46, %47 : vector<8x128xf32>
      %cst_23 = arith.constant 0.000000e+00 : f32
      %49 = vector.broadcast %cst_23 : f32 to vector<8x128xf32>
      %50 = arith.cmpf oge, %48, %49 : vector<8x128xf32>
      %cst_24 = arith.constant 2.000000e-01 : f32
      %51 = vector.broadcast %cst_24 : f32 to vector<8x128xf32>
      %52 = arith.mulf %51, %48 : vector<8x128xf32>
      %53 = arith.select %50, %48, %52 : vector<8x128xi1>, vector<8x128xf32>
      %c0_25 = arith.constant 0 : index
      %c0_26 = arith.constant 0 : index
      %54 = vector.load %arg5[%c0_25, %c0_26] : memref<8x128xf32, #tpu.memory_space<vmem>>, vector<8x128xf32>
      tpu.vector_store %arg5[%c0_25, %c0_26], %53 {strides = array<i32>} : memref<8x128xf32, #tpu.memory_space<vmem>>, vector<8x128xf32>,
    } else {
    }
    return
  }
  func.func @transform_0(%arg0: i32, %arg1: i32) -> (i32, i32) {
    %c0_i32 = arith.constant 0 : i32
    return %arg0, %arg1 : i32, i32
  }
  func.func @transform_1(%arg0: i32, %arg1: i32) -> (i32, i32) {
    %c0_i32 = arith.constant 0 : i32
    %c0_i32_0 = arith.constant 0 : i32
    return %arg1, %c0_i32 : i32, i32
  }
  func.func @transform_2(%arg0: i32, %arg1: i32) -> (i32, i32) {
    %c0_i32 = arith.constant 0 : i32
    %c0_i32_0 = arith.constant 0 : i32
    %c0_i32_1 = arith.constant 0 : i32
    return %c0_i32, %c0_i32_0 : i32, i32
  }
  func.func @transform_3(%arg0: i32, %arg1: i32) -> (i32, i32) {
    %c0_i32 = arith.constant 0 : i32
    %c0_i32_0 = arith.constant 0 : i32
    return %arg0, %c0_i32 : i32, i32
  }
}

</mosaic_0001>

<llo_original>
// kernel: layer_forward.1
$region0: #{layer_forward.1}
  #allocation0 [shape = 'u32[]', space=smem, size = 0x4, offset = 0x4, fixed_abs, tag = 'smem constant byte address 0x4 - core index']
  #allocation1 [shape = 'u32[72,128]{1,0:T(1,128)}', space=vmem, size = 0x9000, scoped, tag = 'internal scratch']
  %s0 = inlined_call_operand.vmem [shape: f32[8,128], index: 0, kind: input, shape index: {}]
  %s1 = inlined_call_operand.vmem [shape: f32[128,128], index: 1, kind: input, shape index: {}]
  %s2 = inlined_call_operand.vmem [shape: f32[3,128], index: 2, kind: input, shape index: {}]
  %s3 = inlined_call_operand.hbm [shape: f32[8,128], index: 3, kind: output, shape index: {}]
  %s4 = sld [smem:[#allocation0]]
  $region30: #{layer_forward.1} parent=0
    _
  %s6 = ssub.s32 1, %s4
  %s7 = scalar_select 0, %s6, %s4
  $region1: #{layer_forward.1} parent=0
    #allocation2 [shape = 'u8[4096]{0}', space=vmem, size = 0x1000, scoped, tag = 'output window, operand 0, single buffered']
    #allocation3 [shape = 's32[1]{0}', space=sflag, size = 0x4, scoped, tag = 'scoped memory for layer_forward.1']
    %8 = vsyncpa [#allocation3], 0
    // Predicated region
    $region2: #{layer_forward.1} parent=1 // pred_check
      _
    $region3: #{layer_forward.1} parent=1 // pred_check_branch
      %10 = sbr.rel (0) target = $region5
    $region4: #{layer_forward.1} parent=1 // pred_region
      _
    $region5: #{layer_forward.1} parent=1 // pred_fallthru
      _
    // Predicated region
    $region6: #{layer_forward.1} parent=1 // pred_check
      _
    $region7: #{layer_forward.1} parent=1 // pred_check_branch
      %12 = sbr.rel (0) target = $region9
    $region8: #{layer_forward.1} parent=1 // pred_region
      _
    $region9: #{layer_forward.1} parent=1 // pred_fallthru
      _
    // Predicated region
    $region10: #{layer_forward.1} parent=1 // pred_check
      _
    $region11: #{layer_forward.1} parent=1 // pred_check_branch
      %14 = sbr.rel (0) target = $region13
    $region12: #{layer_forward.1} parent=1 // pred_region
      _
    $region13: #{layer_forward.1} parent=1 // pred_fallthru
      _
    %p15 = scmp.eq.s32.totalorder 0, 0
    // Predicated region
    $region14: #{layer_forward.1} parent=1 // pred_check
      %p16 = pneg %p15
    $region15: #{layer_forward.1} parent=1 // pred_check_branch
      %18 = sbr.rel (%p16) target = $region17
    $region16: #{layer_forward.1} parent=1 // pred_region
      %19 = vst [vmem:[#allocation2] sm:$0xff] 0.0
    $region17: #{layer_forward.1} parent=1 // pred_fallthru
      _
    %v20 = vld [vmem:[#allocation2] sm:$0xff]
    %v21 = vld [vmem:[%s0] sm:$0xff]
    %v22 = vld [vmem:[%s1] sm:$0xff]
    %v23 = vld [vmem:[%s1 + $0x8] sm:$0xff]
    %v24 = vld [vmem:[%s1 + $0x10] sm:$0xff]
    %v25 = vld [vmem:[%s1 + $0x18] sm:$0xff]
    %v26 = vld [vmem:[%s1 + $0x20] sm:$0xff]
    %v27 = vld [vmem:[%s1 + $0x28] sm:$0xff]
    %v28 = vld [vmem:[%s1 + $0x30] sm:$0xff]
    %v29 = vld [vmem:[%s1 + $0x38] sm:$0xff]
    %v30 = vld [vmem:[%s1 + $0x40] sm:$0xff]
    %v31 = vld [vmem:[%s1 + $0x48] sm:$0xff]
    %v32 = vld [vmem:[%s1 + $0x50] sm:$0xff]
    %v33 = vld [vmem:[%s1 + $0x58] sm:$0xff]
    %v34 = vld [vmem:[%s1 + $0x60] sm:$0xff]
    %v35 = vld [vmem:[%s1 + $0x68] sm:$0xff]
    %v36 = vld [vmem:[%s1 + $0x70] sm:$0xff]
    %v37 = vld [vmem:[%s1 + $0x78] sm:$0xff]
    %38 = vmatpush.msra.mxu0 %v37
    %39 = vmatpush.msra.mxu0 %v36
    %40 = vmatpush.msra.mxu0 %v35
    %41 = vmatpush.msra.mxu0 %v34
    %42 = vmatpush.msra.mxu0 %v33
    %43 = vmatpush.msra.mxu0 %v32
    %44 = vmatpush.msra.mxu0 %v31
    %45 = vmatpush.msra.mxu0 %v30
    %46 = vmatpush.msra.mxu0 %v29
    %47 = vmatpush.msra.mxu0 %v28
    %48 = vmatpush.msra.mxu0 %v27
    %49 = vmatpush.msra.mxu0 %v26
    %50 = vmatpush.msra.mxu0 %v25
    %51 = vmatpush.msra.mxu0 %v24
    %52 = vmatpush.msra.mxu0 %v23
    %53 = vmatpush.msra.mxu0 %v22
    %54 = vmatmul.f32.gmra.mxu0 %v21
    %v55 = vpop.f32.mrf.mxu0
    %v56 = vadd.f32 0.0, %v55
    %57 = vdwg.mxu0
    %v58 = vadd.f32 %v20, %v56
    %59 = vst [vmem:[#allocation2] sm:$0xff] %v58
    // Predicated region
    $region18: #{layer_forward.1} parent=1 // pred_check
      %p60 = pneg %p15
    $region19: #{layer_forward.1} parent=1 // pred_check_branch
      %62 = sbr.rel (%p60) target = $region21
    $region20: #{layer_forward.1} parent=1 // pred_region
      %v63 = vld [vmem:[%s2] sm:$0x1]
      %v64 = vld [vmem:[%s2 + $0x1] sm:$0x1]
      %v65 = vld [vmem:[%s2 + $0x2] sm:$0x1]
      %v66 = vld [vmem:[#allocation2] sm:$0xff]
      %v67 = vperm.slane %v63, 0
      %v68 = vadd.f32 %v66, %v67
      %v69 = vlaneseq
      %v70 = vand.u32 %v69, 127
      %vm71 = vcmp.lt.s32.totalorder %v70, 64
      %v72 = vsel %vm71, 1, 0
      %vm73 = vcmp.eq.s32.totalorder %v72, 1
      %v74 = vsel %vm73, %v68, 0.0
      %75 = vadd.xlane.f32.xlu0 %v74
      %v76 = vpop.xlane.xlu0 %75
      %v77 = vmul.f32 %v76, 0.015625
      %v78 = vsub.f32 %v68, %v77
      %v79 = vmul.f32 %v78, %v78
      %v80 = vsel %vm73, %v79, 0.0
      %81 = vadd.xlane.f32.xlu0 %v80
      %v82 = vpop.xlane.xlu0 %81
      %v83 = vmul.f32 %v82, 0.015625
      %v84 = vadd.f32 %v83, 1e-05
      %v85 = vrsqrt.pop %v84
      %v86 = vmul.f32 %v85, %v84
      %v87 = vmul.f32 %v86, %v85
      %v88 = vmul.f32 0.5, %v87
      %v89 = vsub.f32 1.5, %v88
      %v90 = vmul.f32 %v85, %v89
      %vm91 = vweird.f32 %v84
      %vm92 = vweird.f32 %v85
      %vm93 = vmor %vm91, %vm92
      %v94 = vsel %vm93, %v85, %v90
      %v95 = vmul.f32 %v78, %v94
      %v96 = vperm.slane %v64, 0
      %v97 = vmul.f32 %v95, %v96
      %v98 = vperm.slane %v65, 0
      %v99 = vadd.f32 %v97, %v98
      %vm100 = vcmp.ge.f32.partialorder %v99, 0.0
      %v101 = vmul.f32 %v99, 0.2
      %v102 = vsel %vm100, %v99, %v101
      %103 = vst [vmem:[#allocation2] sm:$0xff] %v102
    $region21: #{layer_forward.1} parent=1 // pred_fallthru
      _
    // Predicated region
    $region22: #{layer_forward.1} parent=1 // pred_check
      _
    $region23: #{layer_forward.1} parent=1 // pred_check_branch
      %105 = sbr.rel (0) target = $region25
    $region24: #{layer_forward.1} parent=1 // pred_region
      %107 = vsyncadd [#allocation3], 0
      %s109 = sshll.u32 [#allocation2], 4
      %s110 = int_to_ptr.vmem [resolvable:$true] %s109
      %s111 = sshll.u32 %s3, 4
      %s112 = int_to_ptr.hbm [resolvable:$true] %s111
      %114 = dma.vmem_to_hbm [thread:$0]  %s110, 128, %s112, [#allocation3]
    $region25: #{layer_forward.1} parent=1 // pred_fallthru
      _
    // Predicated region
    $region26: #{layer_forward.1} parent=1 // pred_check
      _
    $region27: #{layer_forward.1} parent=1 // pred_check_branch
      %116 = sbr.rel (0) target = $region29
    $region28: #{layer_forward.1} parent=1 // pred_region
      %118 = dma.done [#allocation3], 128
    $region29: #{layer_forward.1} parent=1 // pred_fallthru
      _
    %119 = vsyncpa [#allocation3], 1

</llo_original>
